<compile_context>
chip_gen: v7x
topology: tpu7x:2x2x1
jax: 0.10.0
libtpu: 0.0.40
codegen_flags: <defaults>
</compile_context>

<pallas_src>
import functools

import jax
import jax.numpy as jnp
from jax.experimental import pallas as pl
from jax.experimental.pallas import tpu as pltpu


# ----------------------------------------------------------------------------
# Pallas kernels (transposed layout: features on sublanes, batch on lanes)
# ----------------------------------------------------------------------------
def _coupling_kernel_fused(xt_ref, mask_ref, inv_ref,
                           w1_ref, b1_ref, w2_ref, b2_ref, w3_ref, b3_ref,
                           zt_ref):
    """Block-diagonal fused path: 3 matmuls for both nets (2H small)."""
    D = zt_ref.shape[0]
    xt = xt_ref[...]                      # (D, tb)  f32
    mask = mask_ref[...]                  # (D, 1)
    inv = inv_ref[...]                    # (D, 1)   == 1 - mask

    mx = xt * mask                        # (D, tb)  f32

    # layer 1: [scale_hidden ; trans_hidden] in one matmul  -> (2H, tb)
    h = jnp.dot(w1_ref[...], mx.astype(jnp.bfloat16),
                preferred_element_type=jnp.float32) + b1_ref[...]
    h = jnp.maximum(h, 0.0)
    # layer 2: block-diagonal (2H, 2H)
    h = jnp.dot(w2_ref[...], h.astype(jnp.bfloat16),
                preferred_element_type=jnp.float32) + b2_ref[...]
    h = jnp.maximum(h, 0.0)
    # layer 3: block-diagonal (2D, 2H) -> [scale ; translation]
    st = jnp.dot(w3_ref[...], h.astype(jnp.bfloat16),
                 preferred_element_type=jnp.float32) + b3_ref[...]

    scale = jnp.tanh(st[:D, :])           # sublane-aligned row slice
    trans = st[D:, :]

    # z = mask*x + (1-mask) * (x * exp(scale) + translation)
    zt_ref[...] = (mx + inv * (xt * jnp.exp(scale) + trans)).astype(zt_ref.dtype)


def _coupling_kernel_split(xt_ref, mask_ref, inv_ref,
                           w1_ref, b1_ref,
                           sw2_ref, sb2_ref, sw3_ref, sb3_ref,
                           tw2_ref, tb2_ref, tw3_ref, tb3_ref,
                           zt_ref):
    """Split path for large H: layers 2/3 of each net as separate matmuls."""
    D = zt_ref.shape[0]
    H = sw2_ref.shape[0]
    xt = xt_ref[...]
    mask = mask_ref[...]
    inv = inv_ref[...]

    mx = xt * mask

    h = jnp.dot(w1_ref[...], mx.astype(jnp.bfloat16),
                preferred_element_type=jnp.float32) + b1_ref[...]
    h = jnp.maximum(h, 0.0).astype(jnp.bfloat16)        # (2H, tb)
    hs = h[:H, :]                                        # scale-net hidden
    ht = h[H:, :]                                        # trans-net hidden

    hs = jnp.maximum(jnp.dot(sw2_ref[...], hs,
                             preferred_element_type=jnp.float32) + sb2_ref[...], 0.0)
    ht = jnp.maximum(jnp.dot(tw2_ref[...], ht,
                             preferred_element_type=jnp.float32) + tb2_ref[...], 0.0)

    scale = jnp.tanh(jnp.dot(sw3_ref[...], hs.astype(jnp.bfloat16),
                             preferred_element_type=jnp.float32) + sb3_ref[...])
    trans = jnp.dot(tw3_ref[...], ht.astype(jnp.bfloat16),
                    preferred_element_type=jnp.float32) + tb3_ref[...]

    zt_ref[...] = (mx + inv * (xt * jnp.exp(scale) + trans)).astype(zt_ref.dtype)


# ----------------------------------------------------------------------------
# Wrapper
# ----------------------------------------------------------------------------
def _round_up(n, m):
    return ((n + m - 1) // m) * m


def _pick_batch_tile(B, row_tile):
    """Lane-dim padding + tile choice.

    Lane dim must be a multiple of 128.  v5e/v6e (1 TC) want few big steps;
    v7x (2 TCs) wants >= 2 parallel steps whenever the batch allows it.
    """
    Bp = _round_up(max(B, 1), 128)
    if Bp <= 128:
        return Bp, Bp                      # single 128-lane step
    Bp = _round_up(B, 256)                 # splittable into lane-aligned halves
    tb = min(_round_up(row_tile, 128), Bp // 2)
    tb = max(128, (tb // 128) * 128)
    while Bp % tb:
        tb -= 128
    return Bp, tb


@functools.partial(jax.jit, static_argnames=("row_tile",))
def coupling_layer_pallas(x, params, *, row_tile=512):
    """RealNVP coupling-layer forward.  x: (B, input_dim) float32."""
    B, D = x.shape
    Bp, tb = _pick_batch_tile(B, row_tile)

    xt = x.T                               # (D, B): batch -> lane dim
    if Bp != B:
        xt = jnp.pad(xt, ((0, 0), (0, Bp - B)))

    fused = "w2" in params                 # pytree structure -> static at trace
    const = lambda i: (0, 0)               # weights / mask resident across grid

    common = [params["mask"], params["inv"], params["w1"], params["b1"]]
    if fused:
        kernel = _coupling_kernel_fused
        weights = [params["w2"], params["b2"], params["w3"], params["b3"]]
    else:
        kernel = _coupling_kernel_split
        weights = [params["sw2"], params["sb2"], params["sw3"], params["sb3"],
                   params["tw2"], params["tb2"], params["tw3"], params["tb3"]]

    operands = [xt] + common + weights
    in_specs = ([pl.BlockSpec((D, tb), lambda i: (0, i))] +         # x^T tiles
                [pl.BlockSpec(a.shape, const) for a in common + weights])

    out = pl.pallas_call(
        kernel,
        out_shape=jax.ShapeDtypeStruct((D, Bp), jnp.float32),
        grid=(Bp // tb,),
        in_specs=in_specs,
        out_specs=pl.BlockSpec((D, tb), lambda i: (0, i)),
        compiler_params=pltpu.CompilerParams(
            dimension_semantics=("parallel",),        # rows split across TCs (v7x)
            vmem_limit_bytes=32 * 1024 * 1024,
        ),
    )(*operands)
    return out[:, :B].T


# ----------------------------------------------------------------------------
# Host-side parameter handling
# ----------------------------------------------------------------------------
def init_raw_params(key, input_dim, hidden_dim):
    """PyTorch-style init for the two 3-layer nets + alternating binary mask."""
    def lin(k, fan_in, fan_out):
        kw, kb = jax.random.split(k)
        bound = 1.0 / (fan_in ** 0.5)
        w = jax.random.uniform(kw, (fan_in, fan_out), jnp.float32, -bound, bound)
        b = jax.random.uniform(kb, (fan_out,), jnp.float32, -bound, bound)
        return w, b

    ks = jax.random.split(key, 6)
    p = {}
    p["sw1"], p["sb1"] = lin(ks[0], input_dim, hidden_dim)
    p["sw2"], p["sb2"] = lin(ks[1], hidden_dim, hidden_dim)
    p["sw3"], p["sb3"] = lin(ks[2], hidden_dim, input_dim)
    p["tw1"], p["tb1"] = lin(ks[3], input_dim, hidden_dim)
    p["tw2"], p["tb2"] = lin(ks[4], hidden_dim, hidden_dim)
    p["tw3"], p["tb3"] = lin(ks[5], hidden_dim, input_dim)
    p["mask"] = (jnp.arange(input_dim) % 2).astype(jnp.float32)
    return p


def prepare_coupling_params(raw, *, fuse_max_width=256):
    """Transpose / cast / (optionally) block-diag-fuse the two nets.

    Weights are stored transposed (out, in) as bf16 for the MXU; biases and
    mask stay f32 as (rows, 1) columns broadcasting over the lane/batch dim.
    NOTE: the kernel assumes a strictly binary {0,1} mask (as the module uses).
    """
    D, H = raw["sw1"].shape
    bf = jnp.bfloat16
    col = lambda v: v[:, None].astype(jnp.float32)

    p = {
        # layer 1 of both nets is always fused: one (2H, D) x (D, tb) matmul
        "w1": jnp.concatenate([raw["sw1"], raw["tw1"]], axis=1).T.astype(bf),  # (2H, D)
        "b1": col(jnp.concatenate([raw["sb1"], raw["tb1"]])),                  # (2H, 1)
        "mask": col(raw["mask"]),                                              # (D, 1)
        "inv": col(1.0 - raw["mask"]),                                         # (D, 1)
    }
    if 2 * H <= fuse_max_width:
        # Block-diagonal layers 2/3: pays off only while 2H fits an MXU tile.
        zhh = jnp.zeros((H, H), jnp.float32)
        zdh = jnp.zeros((D, H), jnp.float32)
        p["w2"] = jnp.block([[raw["sw2"].T, zhh], [zhh, raw["tw2"].T]]).astype(bf)  # (2H, 2H)
        p["b2"] = col(jnp.concatenate([raw["sb2"], raw["tb2"]]))                    # (2H, 1)
        p["w3"] = jnp.block([[raw["sw3"].T, zdh], [zdh, raw["tw3"].T]]).astype(bf)  # (2D, 2H)
        p["b3"] = col(jnp.concatenate([raw["sb3"], raw["tb3"]]))                    # (2D, 1)
    else:
        p["sw2"] = raw["sw2"].T.astype(bf); p["sb2"] = col(raw["sb2"])
        p["sw3"] = raw["sw3"].T.astype(bf); p["sb3"] = col(raw["sb3"])
        p["tw2"] = raw["tw2"].T.astype(bf); p["tb2"] = col(raw["tb2"])
        p["tw3"] = raw["tw3"].T.astype(bf); p["tb3"] = col(raw["tb3"])
    return p


def coupling_reference(x, p, *, bf16_matmuls=False):
    """Pure-JAX transcription of the PyTorch CouplingLayer.forward."""
    mask = p["mask"]
    mx = mask * x

    def mm(a, w):
        if bf16_matmuls:
            return jnp.dot(a.astype(jnp.bfloat16), w.astype(jnp.bfloat16),
                           preferred_element_type=jnp.float32)
        return jnp.dot(a, w, precision=jax.lax.Precision.HIGHEST)

    def net(h, w1, b1, w2, b2, w3, b3):
        h = jax.nn.relu(mm(h, w1) + b1)
        h = jax.nn.relu(mm(h, w2) + b2)
        return mm(h, w3) + b3

    scale = jnp.tanh(net(mx, p["sw1"], p["sb1"], p["sw2"], p["sb2"],
                         p["sw3"], p["sb3"])) * (1.0 - mask)
    trans = net(mx, p["tw1"], p["tb1"], p["tw2"], p["tb2"],
                p["tw3"], p["tb3"]) * (1.0 - mask)
    return mx + (1.0 - mask) * (x * jnp.exp(scale) + trans)


# ----------------------------------------------------------------------------
if __name__ == "__main__":
    B, INPUT_DIM, HIDDEN_DIM = 256, 32, 64     # e.g. input_dim = pred_len * enc_in

    root = jax.random.PRNGKey(0)
    k_param, k_x = jax.random.split(root)

    raw = init_raw_params(k_param, INPUT_DIM, HIDDEN_DIM)
    x = jax.random.normal(k_x, (B, INPUT_DIM), jnp.float32)

    # fused block-diagonal path (2H = 128 <= 256)
    fused_params = prepare_coupling_params(raw)
    z = coupling_layer_pallas(x, fused_params)
    jax.block_until_ready(z)

    # split path (taken automatically when 2H exceeds the MXU tile width)
    split_params = prepare_coupling_params(raw, fuse_max_width=0)
    z_split = coupling_layer_pallas(x, split_params)
    jax.block_until_ready(z_split)

    z_ref_f32 = coupling_reference(x, raw, bf16_matmuls=False)
    z_ref_bf16 = coupling_reference(x, raw, bf16_matmuls=True)

    assert z.shape == (B, INPUT_DIM)
    assert bool(jnp.all(jnp.isfinite(z)))

    err_bf = float(jnp.max(jnp.abs(z - z_ref_bf16)))
    err_split = float(jnp.max(jnp.abs(z_split - z_ref_bf16)))
    err_f32 = float(jnp.max(jnp.abs(z - z_ref_f32)))
    # tight check vs a bf16-matmul-emulating reference (same arithmetic)
    assert err_bf < 2e-3, f"fused kernel vs bf16 reference: max abs err {err_bf}"
    assert err_split < 2e-3, f"split kernel vs bf16 reference: max abs err {err_split}"
    # loose sanity check vs the exact f32 reference (bf16 MXU inputs)
    assert err_f32 < 1.5e-1, f"kernel vs f32 reference: max abs err {err_f32}"

    print("KERNEL_OK")
</pallas_src>

<mosaic_0001>
module attributes {stable_mosaic.version = 11 : i64} {
  func.func @_coupling_kernel_fused(%arg0: i32, %arg1: memref<32x128xf32, #tpu.memory_space<vmem>>, %arg2: memref<32x1xf32, #tpu.memory_space<vmem>>, %arg3: memref<32x1xf32, #tpu.memory_space<vmem>>, %arg4: memref<128x32xbf16, #tpu.memory_space<vmem>>, %arg5: memref<128x1xf32, #tpu.memory_space<vmem>>, %arg6: memref<128x128xbf16, #tpu.memory_space<vmem>>, %arg7: memref<128x1xf32, #tpu.memory_space<vmem>>, %arg8: memref<64x128xbf16, #tpu.memory_space<vmem>>, %arg9: memref<64x1xf32, #tpu.memory_space<vmem>>, %arg10: memref<32x128xf32, #tpu.memory_space<vmem>>) attributes {dimension_semantics = [#tpu.dimension_semantics<parallel>], iteration_bounds = array<i64: 2>, scalar_prefetch = 0 : i64, scratch_operands = 0 : i64, tpu.core_type = #tpu.core_type<tc>, window_params = [{transform_indices = @transform_0, window_bounds = array<i64: 32, 128>}, {pipeline_mode = #tpu.pipeline_mode<synchronous>, transform_indices = @transform_1, window_bounds = array<i64: 32, 1>}, {pipeline_mode = #tpu.pipeline_mode<synchronous>, transform_indices = @transform_2, window_bounds = array<i64: 32, 1>}, {pipeline_mode = #tpu.pipeline_mode<synchronous>, transform_indices = @transform_3, window_bounds = array<i64: 128, 32>}, {pipeline_mode = #tpu.pipeline_mode<synchronous>, transform_indices = @transform_4, window_bounds = array<i64: 128, 1>}, {pipeline_mode = #tpu.pipeline_mode<synchronous>, transform_indices = @transform_5, window_bounds = array<i64: 128, 128>}, {pipeline_mode = #tpu.pipeline_mode<synchronous>, transform_indices = @transform_6, window_bounds = array<i64: 128, 1>}, {pipeline_mode = #tpu.pipeline_mode<synchronous>, transform_indices = @transform_7, window_bounds = array<i64: 64, 128>}, {pipeline_mode = #tpu.pipeline_mode<synchronous>, transform_indices = @transform_8, window_bounds = array<i64: 64, 1>}, {transform_indices = @transform_9, window_bounds = array<i64: 32, 128>}]} {
    %c0 = arith.constant 0 : index
    %c0_0 = arith.constant 0 : index
    %0 = vector.load %arg1[%c0, %c0_0] : memref<32x128xf32, #tpu.memory_space<vmem>>, vector<32x128xf32>
    %c0_1 = arith.constant 0 : index
    %c0_2 = arith.constant 0 : index
    %1 = vector.load %arg2[%c0_1, %c0_2] : memref<32x1xf32, #tpu.memory_space<vmem>>, vector<32x1xf32>
    %c0_3 = arith.constant 0 : index
    %c0_4 = arith.constant 0 : index
    %2 = vector.load %arg3[%c0_3, %c0_4] : memref<32x1xf32, #tpu.memory_space<vmem>>, vector<32x1xf32>
    %3 = vector.broadcast %1 : vector<32x1xf32> to vector<32x128xf32>
    %4 = arith.mulf %0, %3 : vector<32x128xf32>
    %c0_5 = arith.constant 0 : index
    %c0_6 = arith.constant 0 : index
    %5 = vector.load %arg4[%c0_5, %c0_6] : memref<128x32xbf16, #tpu.memory_space<vmem>>, vector<128x32xbf16>
    %6 = arith.truncf %4 : vector<32x128xf32> to vector<32x128xbf16>
    %cst = arith.constant dense<0.000000e+00> : vector<128x128xf32>
    %7 = tpu.matmul %5, %6, %cst {dimension_numbers = #tpu.dot_dimension_numbers<[1], [0], [0], [1], [0, 0, 1, 1], [], []>} : vector<128x32xbf16>, vector<32x128xbf16>, vector<128x128xf32> -> vector<128x128xf32>
    %c0_7 = arith.constant 0 : index
    %c0_8 = arith.constant 0 : index
    %8 = vector.load %arg5[%c0_7, %c0_8] : memref<128x1xf32, #tpu.memory_space<vmem>>, vector<128x1xf32>
    %9 = vector.broadcast %8 : vector<128x1xf32> to vector<128x128xf32>
    %10 = arith.addf %7, %9 : vector<128x128xf32>
    %cst_9 = arith.constant 0.000000e+00 : f32
    %11 = vector.broadcast %cst_9 : f32 to vector<128x128xf32>
    %12 = arith.maximumf %10, %11 : vector<128x128xf32>
    %c0_10 = arith.constant 0 : index
    %c0_11 = arith.constant 0 : index
    %13 = vector.load %arg6[%c0_10, %c0_11] : memref<128x128xbf16, #tpu.memory_space<vmem>>, vector<128x128xbf16>
    %14 = arith.truncf %12 : vector<128x128xf32> to vector<128x128xbf16>
    %cst_12 = arith.constant dense<0.000000e+00> : vector<128x128xf32>
    %15 = tpu.matmul %13, %14, %cst_12 {dimension_numbers = #tpu.dot_dimension_numbers<[1], [0], [0], [1], [0, 0, 1, 1], [], []>} : vector<128x128xbf16>, vector<128x128xbf16>, vector<128x128xf32> -> vector<128x128xf32>
    %c0_13 = arith.constant 0 : index
    %c0_14 = arith.constant 0 : index
    %16 = vector.load %arg7[%c0_13, %c0_14] : memref<128x1xf32, #tpu.memory_space<vmem>>, vector<128x1xf32>
    %17 = vector.broadcast %16 : vector<128x1xf32> to vector<128x128xf32>
    %18 = arith.addf %15, %17 : vector<128x128xf32>
    %cst_15 = arith.constant 0.000000e+00 : f32
    %19 = vector.broadcast %cst_15 : f32 to vector<128x128xf32>
    %20 = arith.maximumf %18, %19 : vector<128x128xf32>
    %c0_16 = arith.constant 0 : index
    %c0_17 = arith.constant 0 : index
    %21 = vector.load %arg8[%c0_16, %c0_17] : memref<64x128xbf16, #tpu.memory_space<vmem>>, vector<64x128xbf16>
    %22 = arith.truncf %20 : vector<128x128xf32> to vector<128x128xbf16>
    %cst_18 = arith.constant dense<0.000000e+00> : vector<64x128xf32>
    %23 = tpu.matmul %21, %22, %cst_18 {dimension_numbers = #tpu.dot_dimension_numbers<[1], [0], [0], [1], [0, 0, 1, 1], [], []>} : vector<64x128xbf16>, vector<128x128xbf16>, vector<64x128xf32> -> vector<64x128xf32>
    %c0_19 = arith.constant 0 : index
    %c0_20 = arith.constant 0 : index
    %24 = vector.load %arg9[%c0_19, %c0_20] : memref<64x1xf32, #tpu.memory_space<vmem>>, vector<64x1xf32>
    %25 = vector.broadcast %24 : vector<64x1xf32> to vector<64x128xf32>
    %26 = arith.addf %23, %25 : vector<64x128xf32>
    %27 = vector.extract_strided_slice %26 {offsets = [0, 0], sizes = [32, 128], strides = [1, 1]} : vector<64x128xf32> to vector<32x128xf32>
    %28 = math.tanh %27 : vector<32x128xf32>
    %29 = vector.extract_strided_slice %26 {offsets = [32, 0], sizes = [32, 128], strides = [1, 1]} : vector<64x128xf32> to vector<32x128xf32>
    %30 = math.exp %28 : vector<32x128xf32>
    %31 = arith.mulf %0, %30 : vector<32x128xf32>
    %32 = arith.addf %31, %29 : vector<32x128xf32>
    %33 = vector.broadcast %2 : vector<32x1xf32> to vector<32x128xf32>
    %34 = arith.mulf %33, %32 : vector<32x128xf32>
    %35 = arith.addf %4, %34 : vector<32x128xf32>
    %c0_21 = arith.constant 0 : index
    %c0_22 = arith.constant 0 : index
    %36 = vector.load %arg10[%c0_21, %c0_22] : memref<32x128xf32, #tpu.memory_space<vmem>>, vector<32x128xf32>
    tpu.vector_store %arg10[%c0_21, %c0_22], %35 {strides = array<i32>} : memref<32x128xf32, #tpu.memory_space<vmem>>, vector<32x128xf32>,
    return
  }
  func.func @transform_0(%arg0: i32) -> (i32, i32) {
    %c0_i32 = arith.constant 0 : i32
    %c0_i32_0 = arith.constant 0 : i32
    return %c0_i32, %arg0 : i32, i32
  }
  func.func @transform_1(%arg0: i32) -> (i32, i32) {
    %c0_i32 = arith.constant 0 : i32
    %c0_i32_0 = arith.constant 0 : i32
    %c0_i32_1 = arith.constant 0 : i32
    return %c0_i32, %c0_i32_0 : i32, i32
  }
  func.func @transform_2(%arg0: i32) -> (i32, i32) {
    %c0_i32 = arith.constant 0 : i32
    %c0_i32_0 = arith.constant 0 : i32
    %c0_i32_1 = arith.constant 0 : i32
    return %c0_i32, %c0_i32_0 : i32, i32
  }
  func.func @transform_3(%arg0: i32) -> (i32, i32) {
    %c0_i32 = arith.constant 0 : i32
    %c0_i32_0 = arith.constant 0 : i32
    %c0_i32_1 = arith.constant 0 : i32
    return %c0_i32, %c0_i32_0 : i32, i32
  }
  func.func @transform_4(%arg0: i32) -> (i32, i32) {
    %c0_i32 = arith.constant 0 : i32
    %c0_i32_0 = arith.constant 0 : i32
    %c0_i32_1 = arith.constant 0 : i32
    return %c0_i32, %c0_i32_0 : i32, i32
  }
  func.func @transform_5(%arg0: i32) -> (i32, i32) {
    %c0_i32 = arith.constant 0 : i32
    %c0_i32_0 = arith.constant 0 : i32
    %c0_i32_1 = arith.constant 0 : i32
    return %c0_i32, %c0_i32_0 : i32, i32
  }
  func.func @transform_6(%arg0: i32) -> (i32, i32) {
    %c0_i32 = arith.constant 0 : i32
    %c0_i32_0 = arith.constant 0 : i32
    %c0_i32_1 = arith.constant 0 : i32
    return %c0_i32, %c0_i32_0 : i32, i32
  }
  func.func @transform_7(%arg0: i32) -> (i32, i32) {
    %c0_i32 = arith.constant 0 : i32
    %c0_i32_0 = arith.constant 0 : i32
    %c0_i32_1 = arith.constant 0 : i32
    return %c0_i32, %c0_i32_0 : i32, i32
  }
  func.func @transform_8(%arg0: i32) -> (i32, i32) {
    %c0_i32 = arith.constant 0 : i32
    %c0_i32_0 = arith.constant 0 : i32
    %c0_i32_1 = arith.constant 0 : i32
    return %c0_i32, %c0_i32_0 : i32, i32
  }
  func.func @transform_9(%arg0: i32) -> (i32, i32) {
    %c0_i32 = arith.constant 0 : i32
    %c0_i32_0 = arith.constant 0 : i32
    return %c0_i32, %arg0 : i32, i32
  }
}

</mosaic_0001>

<llo_original>
// kernel: coupling_layer_pallas.1
$region0: #{coupling_layer_pallas.1}
  #allocation0 [shape = 'u32[]', space=smem, size = 0x4, offset = 0x4, fixed_abs, tag = 'smem constant byte address 0x4 - core index']
  #allocation1 [shape = 'u32[144,128]{1,0:T(1,128)}', space=vmem, size = 0x12000, scoped, tag = 'internal scratch']
  %s0 = inlined_call_operand.vmem [shape: f32[32,256], index: 0, kind: input, shape index: {}]
  %s1 = inlined_call_operand.vmem [shape: f32[32,1], index: 1, kind: input, shape index: {}]
  %s2 = inlined_call_operand.vmem [shape: f32[32,1], index: 2, kind: input, shape index: {}]
  %s3 = inlined_call_operand.vmem [shape: bf16[128,32], index: 3, kind: input, shape index: {}]
  %s4 = inlined_call_operand.vmem [shape: f32[128,1], index: 4, kind: input, shape index: {}]
  %s5 = inlined_call_operand.vmem [shape: bf16[128,128], index: 5, kind: input, shape index: {}]
  %s6 = inlined_call_operand.vmem [shape: f32[128,1], index: 6, kind: input, shape index: {}]
  %s7 = inlined_call_operand.vmem [shape: bf16[64,128], index: 7, kind: input, shape index: {}]
  %s8 = inlined_call_operand.vmem [shape: f32[64,1], index: 8, kind: input, shape index: {}]
  %s9 = inlined_call_operand.hbm [shape: f32[32,256], index: 9, kind: output, shape index: {}]
  %s10 = sld [smem:[#allocation0]]
  $region107: #{coupling_layer_pallas.1} parent=0
    _
  %s12 = ssub.s32 1, %s10
  %s13 = scalar_select 0, %s12, %s10
  $region1: #{coupling_layer_pallas.1} parent=0
    #allocation2 [shape = 'u8[32768]{0}', space=vmem, size = 0x8000, scoped, tag = 'input window, operand 0']
    #allocation3 [shape = 'u8[32768]{0}', space=vmem, size = 0x8000, scoped, tag = 'output window, operand 0']
    #allocation4 [shape = 's32[2]{0}', space=sflag, size = 0x8, scoped, tag = 'scoped memory for coupling_layer_pallas.1']
    %14 = vsyncpa [#allocation4], 0
    %s15 = scalar_lea.sflag [#allocation4], 1
    %16 = vsyncpa %s15, 0
    loop: start=0, step=1, limit=4
    $region2: #{coupling_layer_pallas.1} parent=1 // loop_pre_header
      _
    $region3: #{coupling_layer_pallas.1} parent=1 // loop_header
      %s18 = sphi 0, %s22
      %p19 = scmp.ge.s32.totalorder %s18, 4
      %s28 = sphi 0, %s30
      %s31 = sphi 0, %s28
      %s32 = sphi 0, %s31
      %s48 = sphi 0, %s32
      %s52 = sphi 0, %s52
      %s54 = sphi 0, %s52
      %s55 = sphi 0, %s54
      %s69 = sphi 0, %s55
      %s73 = sphi 0, %s73
      %s75 = sphi 0, %s73
      %s76 = sphi 0, %s75
      %s90 = sphi 0, %s76
      %s94 = sphi 0, %s94
      %s96 = sphi 0, %s94
      %s97 = sphi 0, %s96
      %s111 = sphi 0, %s97
      %s115 = sphi 0, %s115
      %s117 = sphi 0, %s115
      %s118 = sphi 0, %s117
      %s132 = sphi 0, %s118
      %s136 = sphi 0, %s136
      %s138 = sphi 0, %s136
      %s139 = sphi 0, %s138
      %s153 = sphi 0, %s139
      %s157 = sphi 0, %s157
      %s159 = sphi 0, %s157
      %s160 = sphi 0, %s159
      %s174 = sphi 0, %s160
      %s178 = sphi 0, %s178
      %s180 = sphi 0, %s178
      %s181 = sphi 0, %s180
      %s195 = sphi 0, %s181
      %s199 = sphi 0, %s199
      %s201 = sphi 0, %s199
      %s202 = sphi 0, %s201
      %s216 = sphi 0, %s202
      %s222 = sphi 0, %s224
      %s225 = sphi 0, %s222
      %s226 = sphi 0, %s225
      %s242 = sphi 0, %s226
    $region4: #{coupling_layer_pallas.1} parent=1 // loop_header_branch
      %21 = sbr.rel (%p19) target = $region8
    $region5: #{coupling_layer_pallas.1} parent=1 // loop_body
      %s23 = ssub.s32 %s18, 1
      %s24 = ssub.s32 %s18, 2
      %s25 = sadd.s32 %s18, 1
      %s26 = ssub.s32 %s18, %s25
      %p27 = scmp.eq.s32.totalorder %s26, 0
      %s29 = sadd.s32 %s28, 1
      %s30 = scalar_select %p27, %s28, %s29
      %p33 = pneg %p27
      %p34 = scmp.eq.s32.totalorder %s18, 1
      %p35 = por %p33, %p34
      %p36 = scmp.ne.s32.totalorder %s28, %s31
      %p37 = scmp.eq.s32.totalorder %s18, 0
      %p38 = por %p36, %p37
      %p39 = scmp.ne.s32.totalorder %s28, %s31
      %p40 = scmp.eq.s32.totalorder %s23, 1
      %p41 = por %p39, %p40
      %p42 = scmp.ne.s32.totalorder %s31, %s32
      %p43 = scmp.eq.s32.totalorder %s23, 0
      %p44 = por %p42, %p43
      %p45 = scmp.ne.s32.totalorder %s31, %s32
      %p46 = scmp.eq.s32.totalorder %s24, 1
      %p47 = por %p45, %p46
      %p49 = scmp.ne.s32.totalorder %s32, %s48
      %p50 = scmp.eq.s32.totalorder %s24, 0
      %p51 = por %p49, %p50
      %s53 = sadd.s32 %s52, 1
      %p56 = scmp.eq.s32.totalorder %s18, 1
      %p57 = scmp.ne.s32.totalorder %s52, %s54
      %p58 = scmp.eq.s32.totalorder %s18, 0
      %p59 = por %p57, %p58
      %p60 = scmp.ne.s32.totalorder %s52, %s54
      %p61 = scmp.eq.s32.totalorder %s23, 1
      %p62 = por %p60, %p61
      %p63 = scmp.ne.s32.totalorder %s54, %s55
      %p64 = scmp.eq.s32.totalorder %s23, 0
      %p65 = por %p63, %p64
      %p66 = scmp.ne.s32.totalorder %s54, %s55
      %p67 = scmp.eq.s32.totalorder %s24, 1
      %p68 = por %p66, %p67
      %p70 = scmp.ne.s32.totalorder %s55, %s69
      %p71 = scmp.eq.s32.totalorder %s24, 0
      %p72 = por %p70, %p71
      %s74 = sadd.s32 %s73, 1
      %p77 = scmp.eq.s32.totalorder %s18, 1
      %p78 = scmp.ne.s32.totalorder %s73, %s75
      %p79 = scmp.eq.s32.totalorder %s18, 0
      %p80 = por %p78, %p79
      %p81 = scmp.ne.s32.totalorder %s73, %s75
      %p82 = scmp.eq.s32.totalorder %s23, 1
      %p83 = por %p81, %p82
      %p84 = scmp.ne.s32.totalorder %s75, %s76
      %p85 = scmp.eq.s32.totalorder %s23, 0
      %p86 = por %p84, %p85
      %p87 = scmp.ne.s32.totalorder %s75, %s76
      %p88 = scmp.eq.s32.totalorder %s24, 1
      %p89 = por %p87, %p88
      %p91 = scmp.ne.s32.totalorder %s76, %s90
      %p92 = scmp.eq.s32.totalorder %s24, 0
      %p93 = por %p91, %p92
      %s95 = sadd.s32 %s94, 1
      %p98 = scmp.eq.s32.totalorder %s18, 1
      %p99 = scmp.ne.s32.totalorder %s94, %s96
      %p100 = scmp.eq.s32.totalorder %s18, 0
      %p101 = por %p99, %p100
      %p102 = scmp.ne.s32.totalorder %s94, %s96
      %p103 = scmp.eq.s32.totalorder %s23, 1
      %p104 = por %p102, %p103
      %p105 = scmp.ne.s32.totalorder %s96, %s97
      %p106 = scmp.eq.s32.totalorder %s23, 0
      %p107 = por %p105, %p106
      %p108 = scmp.ne.s32.totalorder %s96, %s97
      %p109 = scmp.eq.s32.totalorder %s24, 1
      %p110 = por %p108, %p109
      %p112 = scmp.ne.s32.totalorder %s97, %s111
      %p113 = scmp.eq.s32.totalorder %s24, 0
      %p114 = por %p112, %p113
      %s116 = sadd.s32 %s115, 1
      %p119 = scmp.eq.s32.totalorder %s18, 1
      %p120 = scmp.ne.s32.totalorder %s115, %s117
      %p121 = scmp.eq.s32.totalorder %s18, 0
      %p122 = por %p120, %p121
      %p123 = scmp.ne.s32.totalorder %s115, %s117
      %p124 = scmp.eq.s32.totalorder %s23, 1
      %p125 = por %p123, %p124
      %p126 = scmp.ne.s32.totalorder %s117, %s118
      %p127 = scmp.eq.s32.totalorder %s23, 0
      %p128 = por %p126, %p127
      %p129 = scmp.ne.s32.totalorder %s117, %s118
      %p130 = scmp.eq.s32.totalorder %s24, 1
      %p131 = por %p129, %p130
      %p133 = scmp.ne.s32.totalorder %s118, %s132
      %p134 = scmp.eq.s32.totalorder %s24, 0
      %p135 = por %p133, %p134
      %s137 = sadd.s32 %s136, 1
      %p140 = scmp.eq.s32.totalorder %s18, 1
      %p141 = scmp.ne.s32.totalorder %s136, %s138
      %p142 = scmp.eq.s32.totalorder %s18, 0
      %p143 = por %p141, %p142
      %p144 = scmp.ne.s32.totalorder %s136, %s138
      %p145 = scmp.eq.s32.totalorder %s23, 1
      %p146 = por %p144, %p145
      %p147 = scmp.ne.s32.totalorder %s138, %s139
      %p148 = scmp.eq.s32.totalorder %s23, 0
      %p149 = por %p147, %p148
      %p150 = scmp.ne.s32.totalorder %s138, %s139
      %p151 = scmp.eq.s32.totalorder %s24, 1
      %p152 = por %p150, %p151
      %p154 = scmp.ne.s32.totalorder %s139, %s153
      %p155 = scmp.eq.s32.totalorder %s24, 0
      %p156 = por %p154, %p155
      %s158 = sadd.s32 %s157, 1
      %p161 = scmp.eq.s32.totalorder %s18, 1
      %p162 = scmp.ne.s32.totalorder %s157, %s159
      %p163 = scmp.eq.s32.totalorder %s18, 0
      %p164 = por %p162, %p163
      %p165 = scmp.ne.s32.totalorder %s157, %s159
      %p166 = scmp.eq.s32.totalorder %s23, 1
      %p167 = por %p165, %p166
      %p168 = scmp.ne.s32.totalorder %s159, %s160
      %p169 = scmp.eq.s32.totalorder %s23, 0
      %p170 = por %p168, %p169
      %p171 = scmp.ne.s32.totalorder %s159, %s160
      %p172 = scmp.eq.s32.totalorder %s24, 1
      %p173 = por %p171, %p172
      %p175 = scmp.ne.s32.totalorder %s160, %s174
      %p176 = scmp.eq.s32.totalorder %s24, 0
      %p177 = por %p175, %p176
      %s179 = sadd.s32 %s178, 1
      %p182 = scmp.eq.s32.totalorder %s18, 1
      %p183 = scmp.ne.s32.totalorder %s178, %s180
      %p184 = scmp.eq.s32.totalorder %s18, 0
      %p185 = por %p183, %p184
      %p186 = scmp.ne.s32.totalorder %s178, %s180
      %p187 = scmp.eq.s32.totalorder %s23, 1
      %p188 = por %p186, %p187
      %p189 = scmp.ne.s32.totalorder %s180, %s181
      %p190 = scmp.eq.s32.totalorder %s23, 0
      %p191 = por %p189, %p190
      %p192 = scmp.ne.s32.totalorder %s180, %s181
      %p193 = scmp.eq.s32.totalorder %s24, 1
      %p194 = por %p192, %p193
      %p196 = scmp.ne.s32.totalorder %s181, %s195
      %p197 = scmp.eq.s32.totalorder %s24, 0
      %p198 = por %p196, %p197
      %s200 = sadd.s32 %s199, 1
      %p203 = scmp.eq.s32.totalorder %s18, 1
      %p204 = scmp.ne.s32.totalorder %s199, %s201
      %p205 = scmp.eq.s32.totalorder %s18, 0
      %p206 = por %p204, %p205
      %p207 = scmp.ne.s32.totalorder %s199, %s201
      %p208 = scmp.eq.s32.totalorder %s23, 1
      %p209 = por %p207, %p208
      %p210 = scmp.ne.s32.totalorder %s201, %s202
      %p211 = scmp.eq.s32.totalorder %s23, 0
      %p212 = por %p210, %p211
      %p213 = scmp.ne.s32.totalorder %s201, %s202
      %p214 = scmp.eq.s32.totalorder %s24, 1
      %p215 = por %p213, %p214
      %p217 = scmp.ne.s32.totalorder %s202, %s216
      %p218 = scmp.eq.s32.totalorder %s24, 0
      %p219 = por %p217, %p218
      %s220 = ssub.s32 %s18, %s25
      %p221 = scmp.eq.s32.totalorder %s220, 0
      %s223 = sadd.s32 %s222, 1
      %s224 = scalar_select %p221, %s222, %s223
      %p227 = pneg %p221
      %p228 = scmp.eq.s32.totalorder %s18, 1
      %p229 = por %p227, %p228
      %p230 = scmp.ne.s32.totalorder %s222, %s225
      %p231 = scmp.eq.s32.totalorder %s18, 0
      %p232 = por %p230, %p231
      %p233 = scmp.ne.s32.totalorder %s222, %s225
      %p234 = scmp.eq.s32.totalorder %s23, 1
      %p235 = por %p233, %p234
      %p236 = scmp.ne.s32.totalorder %s225, %s226
      %p237 = scmp.eq.s32.totalorder %s23, 0
      %p238 = por %p236, %p237
      %p239 = scmp.ne.s32.totalorder %s225, %s226
      %p240 = scmp.eq.s32.totalorder %s24, 1
      %p241 = por %p239, %p240
      %p243 = scmp.ne.s32.totalorder %s226, %s242
      %p244 = scmp.eq.s32.totalorder %s24, 0
      %p245 = por %p243, %p244
      %p246 = scmp.le.s32.totalorder 1, %s18
      %p247 = scmp.lt.s32.totalorder %s18, 3
      %p248 = pnand %p246, %p247
      %p249 = pneg %p248
      // Predicated region
      $region9: #{coupling_layer_pallas.1} parent=5 // pred_check
        _
      $region10: #{coupling_layer_pallas.1} parent=5 // pred_check_branch
        %251 = sbr.rel (%p248) target = $region12
      $region11: #{coupling_layer_pallas.1} parent=5 // pred_region
        %s252 = ssub.s32 %s18, 1
        // Predicated region
        $region13: #{coupling_layer_pallas.1} parent=11 // pred_check
          %p253 = pneg %p65
        $region14: #{coupling_layer_pallas.1} parent=11 // pred_check_branch
          %255 = sbr.rel (%p253) target = $region16
        $region15: #{coupling_layer_pallas.1} parent=11 // pred_region
          _
        $region16: #{coupling_layer_pallas.1} parent=11 // pred_fallthru
          _
        // Predicated region
        $region17: #{coupling_layer_pallas.1} parent=11 // pred_check
          %p256 = pneg %p86
        $region18: #{coupling_layer_pallas.1} parent=11 // pred_check_branch
          %258 = sbr.rel (%p256) target = $region20
        $region19: #{coupling_layer_pallas.1} parent=11 // pred_region
          _
        $region20: #{coupling_layer_pallas.1} parent=11 // pred_fallthru
          _
        // Predicated region
        $region21: #{coupling_layer_pallas.1} parent=11 // pred_check
          %p259 = pneg %p107
        $region22: #{coupling_layer_pallas.1} parent=11 // pred_check_branch
          %261 = sbr.rel (%p259) target = $region24
        $region23: #{coupling_layer_pallas.1} parent=11 // pred_region
          _
        $region24: #{coupling_layer_pallas.1} parent=11 // pred_fallthru
          _
        // Predicated region
        $region25: #{coupling_layer_pallas.1} parent=11 // pred_check
          %p262 = pneg %p128
        $region26: #{coupling_layer_pallas.1} parent=11 // pred_check_branch
          %264 = sbr.rel (%p262) target = $region28
        $region27: #{coupling_layer_pallas.1} parent=11 // pred_region
          _
        $region28: #{coupling_layer_pallas.1} parent=11 // pred_fallthru
          _
        // Predicated region
        $region29: #{coupling_layer_pallas.1} parent=11 // pred_check
          %p265 = pneg %p149
        $region30: #{coupling_layer_pallas.1} parent=11 // pred_check_branch
          %267 = sbr.rel (%p265) target = $region32
        $region31: #{coupling_layer_pallas.1} parent=11 // pred_region
          _
        $region32: #{coupling_layer_pallas.1} parent=11 // pred_fallthru
          _
        // Predicated region
        $region33: #{coupling_layer_pallas.1} parent=11 // pred_check
          %p268 = pneg %p170
        $region34: #{coupling_layer_pallas.1} parent=11 // pred_check_branch
          %270 = sbr.rel (%p268) target = $region36
        $region35: #{coupling_layer_pallas.1} parent=11 // pred_region
          _
        $region36: #{coupling_layer_pallas.1} parent=11 // pred_fallthru
          _
        // Predicated region
        $region37: #{coupling_layer_pallas.1} parent=11 // pred_check
          %p271 = pneg %p191
        $region38: #{coupling_layer_pallas.1} parent=11 // pred_check_branch
          %273 = sbr.rel (%p271) target = $region40
        $region39: #{coupling_layer_pallas.1} parent=11 // pred_region
          _
        $region40: #{coupling_layer_pallas.1} parent=11 // pred_fallthru
          _
        // Predicated region
        $region41: #{coupling_layer_pallas.1} parent=11 // pred_check
          %p274 = pneg %p212
        $region42: #{coupling_layer_pallas.1} parent=11 // pred_check_branch
          %276 = sbr.rel (%p274) target = $region44
        $region43: #{coupling_layer_pallas.1} parent=11 // pred_region
          _
        $region44: #{coupling_layer_pallas.1} parent=11 // pred_fallthru
          _
      $region12: #{coupling_layer_pallas.1} parent=5 // pred_fallthru
        _
      %p277 = scmp.lt.s32.totalorder %s18, 2
      // Predicated region
      $region45: #{coupling_layer_pallas.1} parent=5 // pred_check
        %p278 = pneg %p277
      $region46: #{coupling_layer_pallas.1} parent=5 // pred_check_branch
        %280 = sbr.rel (%p278) target = $region48
      $region47: #{coupling_layer_pallas.1} parent=5 // pred_region
        // Predicated region
        $region49: #{coupling_layer_pallas.1} parent=47 // pred_check
          %p281 = pneg %p38
        $region50: #{coupling_layer_pallas.1} parent=47 // pred_check_branch
          %283 = sbr.rel (%p281) target = $region52
        $region51: #{coupling_layer_pallas.1} parent=47 // pred_region
          %s284 = sand.u32 %s28, 1
          %s285 = sand.u32 %s28, 1
          %s286 = smul.addr %s285, 32
          %s287 = scalar_lea.vmem [#allocation2], %s286
          %s288 = smul.addr %s18, 8
          %s289 = scalar_lea.vmem %s0, %s288
          // Predicated region
          $region53: #{coupling_layer_pallas.1} parent=51 // pred_check
            _
          $region54: #{coupling_layer_pallas.1} parent=51 // pred_check_branch
            %291 = sbr.rel (0) target = $region56
          $region55: #{coupling_layer_pallas.1} parent=51 // pred_region
            // Predicated region
            $region57: #{coupling_layer_pallas.1} parent=55 // pred_check
              _
            $region58: #{coupling_layer_pallas.1} parent=55 // pred_check_branch
              %293 = sbr.rel (0) target = $region60
            $region59: #{coupling_layer_pallas.1} parent=55 // pred_region
              // Predicated region
              $region72: #{coupling_layer_pallas.1} parent=59 // pred_check
                _
              $region73: #{coupling_layer_pallas.1} parent=59 // pred_check_branch
                %314 = sbr.rel (0) target = $region75
              $region74: #{coupling_layer_pallas.1} parent=59 // pred_region
                loop: start=0, step=1, limit=1
                $region76: #{coupling_layer_pallas.1} parent=74 // loop_pre_header
                  _
                $region77: #{coupling_layer_pallas.1} parent=74 // loop_header
                  %s316 = sphi 0, %s320
                  %p317 = scmp.ge.s32.totalorder %s316, 1
                  %s321 = sphi %s289, %s289
                  %s322 = sphi %s287, %s287
                $region78: #{coupling_layer_pallas.1} parent=74 // loop_header_branch
                  %319 = sbr.rel (%p317) target = $region82
                $region79: #{coupling_layer_pallas.1} parent=74 // loop_body
                  %v323 = vld [vmem:[%s321] sm:$0xff]
                  %324 = vst [vmem:[%s322] sm:$0xff] %v323
                  %v325 = vld [vmem:[%s321 + $0x10] sm:$0xff]
                  %326 = vst [vmem:[%s322 + $0x8] sm:$0xff] %v325
                  %v327 = vld [vmem:[%s321 + $0x20] sm:$0xff]
                  %328 = vst [vmem:[%s322 + $0x10] sm:$0xff] %v327
                  %v329 = vld [vmem:[%s321 + $0x30] sm:$0xff]
                  %330 = vst [vmem:[%s322 + $0x18] sm:$0xff] %v329
                $region80: #{coupling_layer_pallas.1} parent=74 // loop_footer
                  %s320 = sadd.s32 1, %s316
                $region81: #{coupling_layer_pallas.1} parent=74 // loop_footer_branch
                  %315 = sbr.rel target = $region77
                $region82: #{coupling_layer_pallas.1} parent=74 // loop_exit
                  _
              $region75: #{coupling_layer_pallas.1} parent=59 // pred_fallthru
                _
              // Predicated region
              $region83: #{coupling_layer_pallas.1} parent=59 // pred_check
                _
              $region84: #{coupling_layer_pallas.1} parent=59 // pred_check_branch
                %332 = sbr.rel target = $region86
              $region85: #{coupling_layer_pallas.1} parent=59 // pred_region
                _
              $region86: #{coupling_layer_pallas.1} parent=59 // pred_fallthru
                _
            $region60: #{coupling_layer_pallas.1} parent=55 // pred_fallthru
              _
            // Predicated region
            $region61: #{coupling_layer_pallas.1} parent=55 // pred_check
              _
            $region62: #{coupling_layer_pallas.1} parent=55 // pred_check_branch
              %295 = sbr.rel target = $region64
            $region63: #{coupling_layer_pallas.1} parent=55 // pred_region
              loop: start=0, step=1, limit=1
              $region65: #{coupling_layer_pallas.1} parent=63 // loop_pre_header
                _
              $region66: #{coupling_layer_pallas.1} parent=63 // loop_header
                %s298 = sphi 0, %s302
                %p299 = scmp.ge.s32.totalorder %s298, 1
                %s303 = sphi %s289, %s289
                %s304 = sphi %s287, %s287
              $region67: #{coupling_layer_pallas.1} parent=63 // loop_header_branch
                %301 = sbr.rel (%p299) target = $region71
              $region68: #{coupling_layer_pallas.1} parent=63 // loop_body
                %v305 = vld [vmem:[%s303] sm:$0xff]
                %306 = vst [vmem:[%s304] sm:$0xff] %v305
                %v307 = vld [vmem:[%s303 + $0x10] sm:$0xff]
                %308 = vst [vmem:[%s304 + $0x8] sm:$0xff] %v307
                %v309 = vld [vmem:[%s303 + $0x20] sm:$0xff]
                %310 = vst [vmem:[%s304 + $0x10] sm:$0xff] %v309
                %v311 = vld [vmem:[%s303 + $0x30] sm:$0xff]
                %312 = vst [vmem:[%s304 + $0x18] sm:$0xff] %v311
              $region69: #{coupling_layer_pallas.1} parent=63 // loop_footer
                %s302 = sadd.s32 1, %s298
              $region70: #{coupling_layer_pallas.1} parent=63 // loop_footer_branch
                %297 = sbr.rel target = $region66
              $region71: #{coupling_layer_pallas.1} parent=63 // loop_exit
                _
            $region64: #{coupling_layer_pallas.1} parent=55 // pred_fallthru
              _
          $region56: #{coupling_layer_pallas.1} parent=51 // pred_fallthru
            _
          %333 = vnop
        $region52: #{coupling_layer_pallas.1} parent=47 // pred_fallthru
          _
      $region48: #{coupling_layer_pallas.1} parent=5 // pred_fallthru
        _
      %p334 = scmp.le.s32.totalorder 1, %s18
      %p335 = scmp.lt.s32.totalorder %s18, 3
      %p336 = pnand %p334, %p335
      %p337 = pneg %p336
      // Predicated region
      $region87: #{coupling_layer_pallas.1} parent=5 // pred_check
        _
      $region88: #{coupling_layer_pallas.1} parent=5 // pred_check_branch
        %339 = sbr.rel (%p336) target = $region90
      $region89: #{coupling_layer_pallas.1} parent=5 // pred_region
        %s340 = ssub.s32 %s18, 1
        %s341 = sand.u32 %s31, 1
        %s342 = sand.u32 %s31, 1
        %s343 = smul.addr %s342, 32
        %s344 = scalar_lea.vmem [#allocation2], %s343
        // Predicated region
        $region91: #{coupling_layer_pallas.1} parent=89 // pred_check
          %p345 = pneg %p44
        $region92: #{coupling_layer_pallas.1} parent=89 // pred_check_branch
          %347 = sbr.rel (%p345) target = $region94
        $region93: #{coupling_layer_pallas.1} parent=89 // pred_region
          _
        $region94: #{coupling_layer_pallas.1} parent=89 // pred_fallthru
          _
        %s348 = sand.u32 %s31, 1
        %s349 = sand.u32 %s31, 1
        %s350 = smul.addr %s349, 32
        %s351 = scalar_lea.vmem [#allocation2], %s350
        %p352 = pneg %p44
        %p353 = pneg %p41
        %p354 = pneg %p65
        %p355 = pneg %p62
        %p356 = pneg %p86
        %p357 = pneg %p83
        %p358 = pneg %p107
        %p359 = pneg %p104
        %p360 = pneg %p128
        %p361 = pneg %p125
        %p362 = pneg %p149
        %p363 = pneg %p146
        %p364 = pneg %p170
        %p365 = pneg %p167
        %p366 = pneg %p191
        %p367 = pneg %p188
        %p368 = pneg %p212
        %p369 = pneg %p209
        %p370 = pneg %p238
        %p371 = pneg %p235
        %s372 = sand.u32 %s225, 1
        %s373 = scalar_lea.sflag [#allocation4], %s372
        %s374 = sand.u32 %s225, 1
        %s375 = smul.addr %s374, 32
        %s376 = scalar_lea.vmem [#allocation3], %s375
        %v378 = vld [vmem:[%s344] sm:$0xff]
        %v379 = vld [vmem:[%s344 + $0x8] sm:$0xff]
        %v380 = vld [vmem:[%s344 + $0x10] sm:$0xff]
        %v381 = vld [vmem:[%s344 + $0x18] sm:$0xff]
        %v382 = vld [vmem:[%s1] sm:$0xff]
        %v383 = vld [vmem:[%s1 + $0x8] sm:$0xff]
        %v384 = vld [vmem:[%s1 + $0x10] sm:$0xff]
        %v385 = vld [vmem:[%s1 + $0x18] sm:$0xff]
        %v386 = vld [vmem:[%s2] sm:$0xff]
        %v387 = vld [vmem:[%s2 + $0x8] sm:$0xff]
        %v388 = vld [vmem:[%s2 + $0x10] sm:$0xff]
        %v389 = vld [vmem:[%s2 + $0x18] sm:$0xff]
        %391 = vset.pattern.permute.xlu0 0
        %392 = vperm.xlu0 %391, %v382
        %v393 = vpop.permute.xlu0 %392
        %396 = vset.pattern.permute.xlu0 0
        %397 = vperm.xlu0 %396, %v383
        %v398 = vpop.permute.xlu0 %397
        %401 = vset.pattern.permute.xlu0 0
        %402 = vperm.xlu0 %401, %v384
        %v403 = vpop.permute.xlu0 %402
        %406 = vset.pattern.permute.xlu0 0
        %407 = vperm.xlu0 %406, %v385
        %v408 = vpop.permute.xlu0 %407
        %v410 = vmul.f32 %v378, %v393
        %v411 = vmul.f32 %v379, %v398
        %v412 = vmul.f32 %v380, %v403
        %v413 = vmul.f32 %v381, %v408
        %v414 = vld [vmem:[%s3] sm:$0xf]
        %v415 = vld [vmem:[%s3 + $0x4] sm:$0xf]
        %v416 = vld [vmem:[%s3 + $0x8] sm:$0xf]
        %v417 = vld [vmem:[%s3 + $0xc] sm:$0xf]
        %v418 = vld [vmem:[%s3 + $0x10] sm:$0xf]
        %v419 = vld [vmem:[%s3 + $0x14] sm:$0xf]
        %v420 = vld [vmem:[%s3 + $0x18] sm:$0xf]
        %v421 = vld [vmem:[%s3 + $0x1c] sm:$0xf]
        %v422 = vld [vmem:[%s3 + $0x20] sm:$0xf]
        %v423 = vld [vmem:[%s3 + $0x24] sm:$0xf]
        %v424 = vld [vmem:[%s3 + $0x28] sm:$0xf]
        %v425 = vld [vmem:[%s3 + $0x2c] sm:$0xf]
        %v426 = vld [vmem:[%s3 + $0x30] sm:$0xf]
        %v427 = vld [vmem:[%s3 + $0x34] sm:$0xf]
        %v428 = vld [vmem:[%s3 + $0x38] sm:$0xf]
        %v429 = vld [vmem:[%s3 + $0x3c] sm:$0xf]
        %v430 = vpack.c.bf16 %v411, %v410
        %v431 = vpack.c.bf16 %v413, %v412
        %v432 = vld [vmem:[%s4] sm:$0xff]
        %v433 = vld [vmem:[%s4 + $0x8] sm:$0xff]
        %v434 = vld [vmem:[%s4 + $0x10] sm:$0xff]
        %v435 = vld [vmem:[%s4 + $0x18] sm:$0xff]
        %v436 = vld [vmem:[%s4 + $0x20] sm:$0xff]
        %v437 = vld [vmem:[%s4 + $0x28] sm:$0xff]
        %v438 = vld [vmem:[%s4 + $0x30] sm:$0xff]
        %v439 = vld [vmem:[%s4 + $0x38] sm:$0xff]
        %v440 = vld [vmem:[%s4 + $0x40] sm:$0xff]
        %v441 = vld [vmem:[%s4 + $0x48] sm:$0xff]
        %v442 = vld [vmem:[%s4 + $0x50] sm:$0xff]
        %v443 = vld [vmem:[%s4 + $0x58] sm:$0xff]
        %v444 = vld [vmem:[%s4 + $0x60] sm:$0xff]
        %v445 = vld [vmem:[%s4 + $0x68] sm:$0xff]
        %v446 = vld [vmem:[%s4 + $0x70] sm:$0xff]
        %v447 = vld [vmem:[%s4 + $0x78] sm:$0xff]
        %449 = vset.pattern.permute.xlu0 0
        %450 = vperm.xlu0 %449, %v432
        %v451 = vpop.permute.xlu0 %450
        %454 = vset.pattern.permute.xlu0 0
        %455 = vperm.xlu0 %454, %v433
        %v456 = vpop.permute.xlu0 %455
        %459 = vset.pattern.permute.xlu0 0
        %460 = vperm.xlu0 %459, %v434
        %v461 = vpop.permute.xlu0 %460
        %464 = vset.pattern.permute.xlu0 0
        %465 = vperm.xlu0 %464, %v435
        %v466 = vpop.permute.xlu0 %465
        %469 = vset.pattern.permute.xlu0 0
        %470 = vperm.xlu0 %469, %v436
        %v471 = vpop.permute.xlu0 %470
        %474 = vset.pattern.permute.xlu0 0
        %475 = vperm.xlu0 %474, %v437
        %v476 = vpop.permute.xlu0 %475
        %479 = vset.pattern.permute.xlu0 0
        %480 = vperm.xlu0 %479, %v438
        %v481 = vpop.permute.xlu0 %480
        %484 = vset.pattern.permute.xlu0 0
        %485 = vperm.xlu0 %484, %v439
        %v486 = vpop.permute.xlu0 %485
        %489 = vset.pattern.permute.xlu0 0
        %490 = vperm.xlu0 %489, %v440
        %v491 = vpop.permute.xlu0 %490
        %494 = vset.pattern.permute.xlu0 0
        %495 = vperm.xlu0 %494, %v441
        %v496 = vpop.permute.xlu0 %495
        %499 = vset.pattern.permute.xlu0 0
        %500 = vperm.xlu0 %499, %v442
        %v501 = vpop.permute.xlu0 %500
        %504 = vset.pattern.permute.xlu0 0
        %505 = vperm.xlu0 %504, %v443
        %v506 = vpop.permute.xlu0 %505
        %509 = vset.pattern.permute.xlu0 0
        %510 = vperm.xlu0 %509, %v444
        %v511 = vpop.permute.xlu0 %510
        %514 = vset.pattern.permute.xlu0 0
        %515 = vperm.xlu0 %514, %v445
        %v516 = vpop.permute.xlu0 %515
        %519 = vset.pattern.permute.xlu0 0
        %520 = vperm.xlu0 %519, %v446
        %v521 = vpop.permute.xlu0 %520
        %524 = vset.pattern.permute.xlu0 0
        %525 = vperm.xlu0 %524, %v447
        %v526 = vpop.permute.xlu0 %525
        %v544 = vunpack.c.l.b16 %v414
        %v545 = vunpack.c.l.b16 %v415
        %v546 = vunpack.c.l.b16 %v416
        %v547 = vunpack.c.l.b16 %v417
        %v548 = vunpack.c.l.b16 %v418
        %v549 = vunpack.c.l.b16 %v419
        %v550 = vunpack.c.l.b16 %v420
        %v551 = vunpack.c.l.b16 %v421
        %v552 = vunpack.c.l.b16 %v422
        %v553 = vunpack.c.l.b16 %v423
        %v554 = vunpack.c.l.b16 %v424
        %v555 = vunpack.c.l.b16 %v425
        %v556 = vunpack.c.l.b16 %v426
        %v557 = vunpack.c.l.b16 %v427
        %v558 = vunpack.c.l.b16 %v428
        %v559 = vunpack.c.l.b16 %v429
        %v560 = vpack.c.b16 %v545, %v544
        %v561 = vpack.c.b16 %v547, %v546
        %v562 = vpack.c.b16 %v549, %v548
        %v563 = vpack.c.b16 %v551, %v550
        %v564 = vpack.c.b16 %v553, %v552
        %v565 = vpack.c.b16 %v555, %v554
        %v566 = vpack.c.b16 %v557, %v556
        %v567 = vpack.c.b16 %v559, %v558
        %vm568 = vcmask 261120
        %v570 = vsel %vm568, %v560, 0
        %v573 = vsel %vm568, %v561, 0
        %v576 = vsel %vm568, %v562, 0
        %v579 = vsel %vm568, %v563, 0
        %v582 = vsel %vm568, %v564, 0
        %v585 = vsel %vm568, %v565, 0
        %v588 = vsel %vm568, %v566, 0
        %v591 = vsel %vm568, %v567, 0
        %593 = vmatprep.subr.bf16.mxu0 0
        %594 = vmatpush1.bf16.msra.mxu0 %v430
        %595 = vmatprep.subr.bf16.mxu0 0
        %596 = vmatpush1.bf16.msra.mxu0 %v431
        %597 = vmatprep.subr.bf16.mxu0 0
        %598 = vmatpush1.bf16.msra.mxu0 0
        %599 = vmatprep.subr.bf16.mxu0 0
        %600 = vmatpush1.bf16.msra.mxu0 0
        %601 = vmatprep.subr.bf16.mxu0 0
        %602 = vmatpush1.bf16.msra.mxu0 0
        %603 = vmatprep.subr.bf16.mxu0 0
        %604 = vmatpush1.bf16.msra.mxu0 0
        %605 = vmatprep.subr.bf16.mxu0 0
        %606 = vmatpush1.bf16.msra.mxu0 0
        %607 = vmatprep.subr.bf16.mxu0 0
        %608 = vmatpush1.bf16.msra.mxu0 0
        %609 = vmatprep.subr.bf16.mxu0 0
        %610 = vmatpush1.bf16.msra.mxu0 0
        %611 = vmatprep.subr.bf16.mxu0 0
        %612 = vmatpush1.bf16.msra.mxu0 0
        %613 = vmatprep.subr.bf16.mxu0 0
        %614 = vmatpush1.bf16.msra.mxu0 0
        %615 = vmatprep.subr.bf16.mxu0 0
        %616 = vmatpush1.bf16.msra.mxu0 0
        %617 = vmatprep.subr.bf16.mxu0 0
        %618 = vmatpush1.bf16.msra.mxu0 0
        %619 = vmatprep.subr.bf16.mxu0 0
        %620 = vmatpush1.bf16.msra.mxu0 0
        %621 = vmatprep.subr.bf16.mxu0 0
        %622 = vmatpush1.bf16.msra.mxu0 0
        %623 = vmatprep.subr.bf16.mxu0 0
        %624 = vmatpush1.bf16.msra.mxu0 0
        %625 = vmatprep.mubr.bf16.mxu0 0
        %626 = vmatmul.mubr.bf16.gmra.mrb[0].mxu0 %v570
        %v627 = vpop.f32.mrb[0].mxu0
        %v628 = vadd.f32 %v451, %v627
        %v629 = vpop.f32.mrb[0].mxu0
        %v630 = vpop.f32.mrb[0].mxu0
        %v631 = vadd.f32 %v456, %v630
        %v632 = vpop.f32.mrb[0].mxu0
        %633 = vmatprep.mubr.bf16.mxu0 0
        %634 = vmatmul.mubr.bf16.gmra.mrb[0].mxu0 %v573
        %v635 = vpop.f32.mrb[0].mxu0
        %v636 = vadd.f32 %v461, %v635
        %v637 = vpop.f32.mrb[0].mxu0
        %v638 = vpop.f32.mrb[0].mxu0
        %v639 = vadd.f32 %v466, %v638
        %v640 = vpop.f32.mrb[0].mxu0
        %641 = vmatprep.mubr.bf16.mxu0 0
        %642 = vmatmul.mubr.bf16.gmra.mrb[0].mxu0 %v576
        %v643 = vpop.f32.mrb[0].mxu0
        %v644 = vadd.f32 %v471, %v643
        %v645 = vpop.f32.mrb[0].mxu0
        %v646 = vpop.f32.mrb[0].mxu0
        %v647 = vadd.f32 %v476, %v646
        %v648 = vpop.f32.mrb[0].mxu0
        %649 = vmatprep.mubr.bf16.mxu0 0
        %650 = vmatmul.mubr.bf16.gmra.mrb[0].mxu0 %v579
        %v651 = vpop.f32.mrb[0].mxu0
        %v652 = vadd.f32 %v481, %v651
        %v653 = vpop.f32.mrb[0].mxu0
        %v654 = vpop.f32.mrb[0].mxu0
        %v655 = vadd.f32 %v486, %v654
        %v656 = vpop.f32.mrb[0].mxu0
        %657 = vmatprep.mubr.bf16.mxu0 0
        %658 = vmatmul.mubr.bf16.gmra.mrb[0].mxu0 %v582
        %v659 = vpop.f32.mrb[0].mxu0
        %v660 = vadd.f32 %v491, %v659
        %v661 = vpop.f32.mrb[0].mxu0
        %v662 = vpop.f32.mrb[0].mxu0
        %v663 = vadd.f32 %v496, %v662
        %v664 = vpop.f32.mrb[0].mxu0
        %665 = vmatprep.mubr.bf16.mxu0 0
        %666 = vmatmul.mubr.bf16.gmra.mrb[0].mxu0 %v585
        %v667 = vpop.f32.mrb[0].mxu0
        %v668 = vadd.f32 %v501, %v667
        %v669 = vpop.f32.mrb[0].mxu0
        %v670 = vpop.f32.mrb[0].mxu0
        %v671 = vadd.f32 %v506, %v670
        %v672 = vpop.f32.mrb[0].mxu0
        %673 = vmatprep.mubr.bf16.mxu0 0
        %674 = vmatmul.mubr.bf16.gmra.mrb[0].mxu0 %v588
        %v675 = vpop.f32.mrb[0].mxu0
        %v676 = vadd.f32 %v511, %v675
        %v677 = vpop.f32.mrb[0].mxu0
        %v678 = vpop.f32.mrb[0].mxu0
        %v679 = vadd.f32 %v516, %v678
        %v680 = vpop.f32.mrb[0].mxu0
        %681 = vmatprep.mubr.bf16.mxu0 0
        %682 = vmatmul.mubr.bf16.gmra.mrb[0].mxu0 %v591
        %v683 = vpop.f32.mrb[0].mxu0
        %v684 = vadd.f32 %v521, %v683
        %v685 = vpop.f32.mrb[0].mxu0
        %v686 = vpop.f32.mrb[0].mxu0
        %v687 = vadd.f32 %v526, %v686
        %v688 = vpop.f32.mrb[0].mxu0
        %689 = vdwg.mxu0
        %v690 = vmax.f32 %v628, 0.0
        %v691 = vmax.f32 %v631, 0.0
        %v692 = vmax.f32 %v636, 0.0
        %v693 = vmax.f32 %v639, 0.0
        %v694 = vmax.f32 %v644, 0.0
        %v695 = vmax.f32 %v647, 0.0
        %v696 = vmax.f32 %v652, 0.0
        %v697 = vmax.f32 %v655, 0.0
        %v698 = vmax.f32 %v660, 0.0
        %v699 = vmax.f32 %v663, 0.0
        %v700 = vmax.f32 %v668, 0.0
        %v701 = vmax.f32 %v671, 0.0
        %v702 = vmax.f32 %v676, 0.0
        %v703 = vmax.f32 %v679, 0.0
        %v704 = vmax.f32 %v684, 0.0
        %v705 = vmax.f32 %v687, 0.0
        %v706 = vld [vmem:[%s5] sm:$0xf]
        %v707 = vld [vmem:[%s5 + $0x4] sm:$0xf]
        %v708 = vld [vmem:[%s5 + $0x8] sm:$0xf]
        %v709 = vld [vmem:[%s5 + $0xc] sm:$0xf]
        %v710 = vld [vmem:[%s5 + $0x10] sm:$0xf]
        %v711 = vld [vmem:[%s5 + $0x14] sm:$0xf]
        %v712 = vld [vmem:[%s5 + $0x18] sm:$0xf]
        %v713 = vld [vmem:[%s5 + $0x1c] sm:$0xf]
        %v714 = vld [vmem:[%s5 + $0x20] sm:$0xf]
        %v715 = vld [vmem:[%s5 + $0x24] sm:$0xf]
        %v716 = vld [vmem:[%s5 + $0x28] sm:$0xf]
        %v717 = vld [vmem:[%s5 + $0x2c] sm:$0xf]
        %v718 = vld [vmem:[%s5 + $0x30] sm:$0xf]
        %v719 = vld [vmem:[%s5 + $0x34] sm:$0xf]
        %v720 = vld [vmem:[%s5 + $0x38] sm:$0xf]
        %v721 = vld [vmem:[%s5 + $0x3c] sm:$0xf]
        %v722 = vpack.c.bf16 %v691, %v690
        %v723 = vpack.c.bf16 %v693, %v692
        %v724 = vpack.c.bf16 %v695, %v694
        %v725 = vpack.c.bf16 %v697, %v696
        %v726 = vpack.c.bf16 %v699, %v698
        %v727 = vpack.c.bf16 %v701, %v700
        %v728 = vpack.c.bf16 %v703, %v702
        %v729 = vpack.c.bf16 %v705, %v704
        %v730 = vld [vmem:[%s6] sm:$0xff]
        %v731 = vld [vmem:[%s6 + $0x8] sm:$0xff]
        %v732 = vld [vmem:[%s6 + $0x10] sm:$0xff]
        %v733 = vld [vmem:[%s6 + $0x18] sm:$0xff]
        %v734 = vld [vmem:[%s6 + $0x20] sm:$0xff]
        %v735 = vld [vmem:[%s6 + $0x28] sm:$0xff]
        %v736 = vld [vmem:[%s6 + $0x30] sm:$0xff]
        %v737 = vld [vmem:[%s6 + $0x38] sm:$0xff]
        %v738 = vld [vmem:[%s6 + $0x40] sm:$0xff]
        %v739 = vld [vmem:[%s6 + $0x48] sm:$0xff]
        %v740 = vld [vmem:[%s6 + $0x50] sm:$0xff]
        %v741 = vld [vmem:[%s6 + $0x58] sm:$0xff]
        %v742 = vld [vmem:[%s6 + $0x60] sm:$0xff]
        %v743 = vld [vmem:[%s6 + $0x68] sm:$0xff]
        %v744 = vld [vmem:[%s6 + $0x70] sm:$0xff]
        %v745 = vld [vmem:[%s6 + $0x78] sm:$0xff]
        %747 = vset.pattern.permute.xlu0 0
        %748 = vperm.xlu0 %747, %v730
        %v749 = vpop.permute.xlu0 %748
        %752 = vset.pattern.permute.xlu0 0
        %753 = vperm.xlu0 %752, %v731
        %v754 = vpop.permute.xlu0 %753
        %757 = vset.pattern.permute.xlu0 0
        %758 = vperm.xlu0 %757, %v732
        %v759 = vpop.permute.xlu0 %758
        %762 = vset.pattern.permute.xlu0 0
        %763 = vperm.xlu0 %762, %v733
        %v764 = vpop.permute.xlu0 %763
        %767 = vset.pattern.permute.xlu0 0
        %768 = vperm.xlu0 %767, %v734
        %v769 = vpop.permute.xlu0 %768
        %772 = vset.pattern.permute.xlu0 0
        %773 = vperm.xlu0 %772, %v735
        %v774 = vpop.permute.xlu0 %773
        %777 = vset.pattern.permute.xlu0 0
        %778 = vperm.xlu0 %777, %v736
        %v779 = vpop.permute.xlu0 %778
        %782 = vset.pattern.permute.xlu0 0
        %783 = vperm.xlu0 %782, %v737
        %v784 = vpop.permute.xlu0 %783
        %787 = vset.pattern.permute.xlu0 0
        %788 = vperm.xlu0 %787, %v738
        %v789 = vpop.permute.xlu0 %788
        %792 = vset.pattern.permute.xlu0 0
        %793 = vperm.xlu0 %792, %v739
        %v794 = vpop.permute.xlu0 %793
        %797 = vset.pattern.permute.xlu0 0
        %798 = vperm.xlu0 %797, %v740
        %v799 = vpop.permute.xlu0 %798
        %802 = vset.pattern.permute.xlu0 0
        %803 = vperm.xlu0 %802, %v741
        %v804 = vpop.permute.xlu0 %803
        %807 = vset.pattern.permute.xlu0 0
        %808 = vperm.xlu0 %807, %v742
        %v809 = vpop.permute.xlu0 %808
        %812 = vset.pattern.permute.xlu0 0
        %813 = vperm.xlu0 %812, %v743
        %v814 = vpop.permute.xlu0 %813
        %817 = vset.pattern.permute.xlu0 0
        %818 = vperm.xlu0 %817, %v744
        %v819 = vpop.permute.xlu0 %818
        %822 = vset.pattern.permute.xlu0 0
        %823 = vperm.xlu0 %822, %v745
        %v824 = vpop.permute.xlu0 %823
        %v842 = vunpack.c.l.b16 %v706
        %v843 = vunpack.c.l.b16 %v707
        %v844 = vunpack.c.l.b16 %v708
        %v845 = vunpack.c.l.b16 %v709
        %v846 = vunpack.c.l.b16 %v710
        %v847 = vunpack.c.l.b16 %v711
        %v848 = vunpack.c.l.b16 %v712
        %v849 = vunpack.c.l.b16 %v713
        %v850 = vunpack.c.l.b16 %v714
        %v851 = vunpack.c.l.b16 %v715
        %v852 = vunpack.c.l.b16 %v716
        %v853 = vunpack.c.l.b16 %v717
        %v854 = vunpack.c.l.b16 %v718
        %v855 = vunpack.c.l.b16 %v719
        %v856 = vunpack.c.l.b16 %v720
        %v857 = vunpack.c.l.b16 %v721
        %v858 = vpack.c.b16 %v843, %v842
        %v859 = vpack.c.b16 %v845, %v844
        %v860 = vpack.c.b16 %v847, %v846
        %v861 = vpack.c.b16 %v849, %v848
        %v862 = vpack.c.b16 %v851, %v850
        %v863 = vpack.c.b16 %v853, %v852
        %v864 = vpack.c.b16 %v855, %v854
        %v865 = vpack.c.b16 %v857, %v856
        %874 = vmatprep.subr.bf16.mxu0 0
        %875 = vmatpush1.bf16.msra.mxu0 %v722
        %876 = vmatprep.subr.bf16.mxu0 0
        %877 = vmatpush1.bf16.msra.mxu0 %v723
        %878 = vmatprep.subr.bf16.mxu0 0
        %879 = vmatpush1.bf16.msra.mxu0 %v724
        %880 = vmatprep.subr.bf16.mxu0 0
        %881 = vmatpush1.bf16.msra.mxu0 %v725
        %882 = vmatprep.subr.bf16.mxu0 0
        %883 = vmatpush1.bf16.msra.mxu0 %v726
        %884 = vmatprep.subr.bf16.mxu0 0
        %885 = vmatpush1.bf16.msra.mxu0 %v727
        %886 = vmatprep.subr.bf16.mxu0 0
        %887 = vmatpush1.bf16.msra.mxu0 %v728
        %888 = vmatprep.subr.bf16.mxu0 0
        %889 = vmatpush1.bf16.msra.mxu0 %v729
        %890 = vmatprep.subr.bf16.mxu0 0
        %891 = vmatpush1.bf16.msra.mxu0 0
        %892 = vmatprep.subr.bf16.mxu0 0
        %893 = vmatpush1.bf16.msra.mxu0 0
        %894 = vmatprep.subr.bf16.mxu0 0
        %895 = vmatpush1.bf16.msra.mxu0 0
        %896 = vmatprep.subr.bf16.mxu0 0
        %897 = vmatpush1.bf16.msra.mxu0 0
        %898 = vmatprep.subr.bf16.mxu0 0
        %899 = vmatpush1.bf16.msra.mxu0 0
        %900 = vmatprep.subr.bf16.mxu0 0
        %901 = vmatpush1.bf16.msra.mxu0 0
        %902 = vmatprep.subr.bf16.mxu0 0
        %903 = vmatpush1.bf16.msra.mxu0 0
        %904 = vmatprep.subr.bf16.mxu0 0
        %905 = vmatpush1.bf16.msra.mxu0 0
        %906 = vmatprep.mubr.bf16.mxu0 0
        %907 = vmatmul.mubr.bf16.gmra.mrb[0].mxu0 %v858
        %v908 = vpop.f32.mrb[0].mxu0
        %v909 = vadd.f32 %v749, %v908
        %v910 = vpop.f32.mrb[0].mxu0
        %v911 = vpop.f32.mrb[0].mxu0
        %v912 = vadd.f32 %v754, %v911
        %v913 = vpop.f32.mrb[0].mxu0
        %914 = vmatprep.mubr.bf16.mxu0 0
        %915 = vmatmul.mubr.bf16.gmra.mrb[0].mxu0 %v859
        %v916 = vpop.f32.mrb[0].mxu0
        %v917 = vadd.f32 %v759, %v916
        %v918 = vpop.f32.mrb[0].mxu0
        %v919 = vpop.f32.mrb[0].mxu0
        %v920 = vadd.f32 %v764, %v919
        %v921 = vpop.f32.mrb[0].mxu0
        %922 = vmatprep.mubr.bf16.mxu0 0
        %923 = vmatmul.mubr.bf16.gmra.mrb[0].mxu0 %v860
        %v924 = vpop.f32.mrb[0].mxu0
        %v925 = vadd.f32 %v769, %v924
        %v926 = vpop.f32.mrb[0].mxu0
        %v927 = vpop.f32.mrb[0].mxu0
        %v928 = vadd.f32 %v774, %v927
        %v929 = vpop.f32.mrb[0].mxu0
        %930 = vmatprep.mubr.bf16.mxu0 0
        %931 = vmatmul.mubr.bf16.gmra.mrb[0].mxu0 %v861
        %v932 = vpop.f32.mrb[0].mxu0
        %v933 = vadd.f32 %v779, %v932
        %v934 = vpop.f32.mrb[0].mxu0
        %v935 = vpop.f32.mrb[0].mxu0
        %v936 = vadd.f32 %v784, %v935
        %v937 = vpop.f32.mrb[0].mxu0
        %938 = vmatprep.mubr.bf16.mxu0 0
        %939 = vmatmul.mubr.bf16.gmra.mrb[0].mxu0 %v862
        %v940 = vpop.f32.mrb[0].mxu0
        %v941 = vadd.f32 %v789, %v940
        %v942 = vpop.f32.mrb[0].mxu0
        %v943 = vpop.f32.mrb[0].mxu0
        %v944 = vadd.f32 %v794, %v943
        %v945 = vpop.f32.mrb[0].mxu0
        %946 = vmatprep.mubr.bf16.mxu0 0
        %947 = vmatmul.mubr.bf16.gmra.mrb[0].mxu0 %v863
        %v948 = vpop.f32.mrb[0].mxu0
        %v949 = vadd.f32 %v799, %v948
        %v950 = vpop.f32.mrb[0].mxu0
        %v951 = vpop.f32.mrb[0].mxu0
        %v952 = vadd.f32 %v804, %v951
        %v953 = vpop.f32.mrb[0].mxu0
        %954 = vmatprep.mubr.bf16.mxu0 0
        %955 = vmatmul.mubr.bf16.gmra.mrb[0].mxu0 %v864
        %v956 = vpop.f32.mrb[0].mxu0
        %v957 = vadd.f32 %v809, %v956
        %v958 = vpop.f32.mrb[0].mxu0
        %v959 = vpop.f32.mrb[0].mxu0
        %v960 = vadd.f32 %v814, %v959
        %v961 = vpop.f32.mrb[0].mxu0
        %962 = vmatprep.mubr.bf16.mxu0 0
        %963 = vmatmul.mubr.bf16.gmra.mrb[0].mxu0 %v865
        %v964 = vpop.f32.mrb[0].mxu0
        %v965 = vadd.f32 %v819, %v964
        %v966 = vpop.f32.mrb[0].mxu0
        %v967 = vpop.f32.mrb[0].mxu0
        %v968 = vadd.f32 %v824, %v967
        %v969 = vpop.f32.mrb[0].mxu0
        %970 = vdwg.mxu0
        %v971 = vmax.f32 %v909, 0.0
        %v972 = vmax.f32 %v912, 0.0
        %v973 = vmax.f32 %v917, 0.0
        %v974 = vmax.f32 %v920, 0.0
        %v975 = vmax.f32 %v925, 0.0
        %v976 = vmax.f32 %v928, 0.0
        %v977 = vmax.f32 %v933, 0.0
        %v978 = vmax.f32 %v936, 0.0
        %v979 = vmax.f32 %v941, 0.0
        %v980 = vmax.f32 %v944, 0.0
        %v981 = vmax.f32 %v949, 0.0
        %v982 = vmax.f32 %v952, 0.0
        %v983 = vmax.f32 %v957, 0.0
        %v984 = vmax.f32 %v960, 0.0
        %v985 = vmax.f32 %v965, 0.0
        %v986 = vmax.f32 %v968, 0.0
        %v987 = vld [vmem:[%s7] sm:$0xf]
        %v988 = vld [vmem:[%s7 + $0x4] sm:$0xf]
        %v989 = vld [vmem:[%s7 + $0x8] sm:$0xf]
        %v990 = vld [vmem:[%s7 + $0xc] sm:$0xf]
        %v991 = vld [vmem:[%s7 + $0x10] sm:$0xf]
        %v992 = vld [vmem:[%s7 + $0x14] sm:$0xf]
        %v993 = vld [vmem:[%s7 + $0x18] sm:$0xf]
        %v994 = vld [vmem:[%s7 + $0x1c] sm:$0xf]
        %v995 = vpack.c.bf16 %v972, %v971
        %v996 = vpack.c.bf16 %v974, %v973
        %v997 = vpack.c.bf16 %v976, %v975
        %v998 = vpack.c.bf16 %v978, %v977
        %v999 = vpack.c.bf16 %v980, %v979
        %v1000 = vpack.c.bf16 %v982, %v981
        %v1001 = vpack.c.bf16 %v984, %v983
        %v1002 = vpack.c.bf16 %v986, %v985
        %v1003 = vld [vmem:[%s8] sm:$0xff]
        %v1004 = vld [vmem:[%s8 + $0x8] sm:$0xff]
        %v1005 = vld [vmem:[%s8 + $0x10] sm:$0xff]
        %v1006 = vld [vmem:[%s8 + $0x18] sm:$0xff]
        %v1007 = vld [vmem:[%s8 + $0x20] sm:$0xff]
        %v1008 = vld [vmem:[%s8 + $0x28] sm:$0xff]
        %v1009 = vld [vmem:[%s8 + $0x30] sm:$0xff]
        %v1010 = vld [vmem:[%s8 + $0x38] sm:$0xff]
        %1012 = vset.pattern.permute.xlu0 0
        %1013 = vperm.xlu0 %1012, %v1003
        %v1014 = vpop.permute.xlu0 %1013
        %1017 = vset.pattern.permute.xlu0 0
        %1018 = vperm.xlu0 %1017, %v1004
        %v1019 = vpop.permute.xlu0 %1018
        %1022 = vset.pattern.permute.xlu0 0
        %1023 = vperm.xlu0 %1022, %v1005
        %v1024 = vpop.permute.xlu0 %1023
        %1027 = vset.pattern.permute.xlu0 0
        %1028 = vperm.xlu0 %1027, %v1006
        %v1029 = vpop.permute.xlu0 %1028
        %1032 = vset.pattern.permute.xlu0 0
        %1033 = vperm.xlu0 %1032, %v1007
        %v1034 = vpop.permute.xlu0 %1033
        %1037 = vset.pattern.permute.xlu0 0
        %1038 = vperm.xlu0 %1037, %v1008
        %v1039 = vpop.permute.xlu0 %1038
        %1042 = vset.pattern.permute.xlu0 0
        %1043 = vperm.xlu0 %1042, %v1009
        %v1044 = vpop.permute.xlu0 %1043
        %1047 = vset.pattern.permute.xlu0 0
        %1048 = vperm.xlu0 %1047, %v1010
        %v1049 = vpop.permute.xlu0 %1048
        %v1059 = vunpack.c.l.b16 %v987
        %v1060 = vunpack.c.l.b16 %v988
        %v1061 = vunpack.c.l.b16 %v989
        %v1062 = vunpack.c.l.b16 %v990
        %v1063 = vunpack.c.l.b16 %v991
        %v1064 = vunpack.c.l.b16 %v992
        %v1065 = vunpack.c.l.b16 %v993
        %v1066 = vunpack.c.l.b16 %v994
        %v1067 = vpack.c.b16 %v1060, %v1059
        %v1068 = vpack.c.b16 %v1062, %v1061
        %v1069 = vpack.c.b16 %v1064, %v1063
        %v1070 = vpack.c.b16 %v1066, %v1065
        %1075 = vmatprep.subr.bf16.mxu0 0
        %1076 = vmatpush1.bf16.msra.mxu0 %v995
        %1077 = vmatprep.subr.bf16.mxu0 0
        %1078 = vmatpush1.bf16.msra.mxu0 %v996
        %1079 = vmatprep.subr.bf16.mxu0 0
        %1080 = vmatpush1.bf16.msra.mxu0 %v997
        %1081 = vmatprep.subr.bf16.mxu0 0
        %1082 = vmatpush1.bf16.msra.mxu0 %v998
        %1083 = vmatprep.subr.bf16.mxu0 0
        %1084 = vmatpush1.bf16.msra.mxu0 %v999
        %1085 = vmatprep.subr.bf16.mxu0 0
        %1086 = vmatpush1.bf16.msra.mxu0 %v1000
        %1087 = vmatprep.subr.bf16.mxu0 0
        %1088 = vmatpush1.bf16.msra.mxu0 %v1001
        %1089 = vmatprep.subr.bf16.mxu0 0
        %1090 = vmatpush1.bf16.msra.mxu0 %v1002
        %1091 = vmatprep.subr.bf16.mxu0 0
        %1092 = vmatpush1.bf16.msra.mxu0 0
        %1093 = vmatprep.subr.bf16.mxu0 0
        %1094 = vmatpush1.bf16.msra.mxu0 0
        %1095 = vmatprep.subr.bf16.mxu0 0
        %1096 = vmatpush1.bf16.msra.mxu0 0
        %1097 = vmatprep.subr.bf16.mxu0 0
        %1098 = vmatpush1.bf16.msra.mxu0 0
        %1099 = vmatprep.subr.bf16.mxu0 0
        %1100 = vmatpush1.bf16.msra.mxu0 0
        %1101 = vmatprep.subr.bf16.mxu0 0
        %1102 = vmatpush1.bf16.msra.mxu0 0
        %1103 = vmatprep.subr.bf16.mxu0 0
        %1104 = vmatpush1.bf16.msra.mxu0 0
        %1105 = vmatprep.subr.bf16.mxu0 0
        %1106 = vmatpush1.bf16.msra.mxu0 0
        %1107 = vmatprep.mubr.bf16.mxu0 0
        %1108 = vmatmul.mubr.bf16.gmra.mrb[0].mxu0 %v1067
        %v1109 = vpop.f32.mrb[0].mxu0
        %v1110 = vadd.f32 %v1014, %v1109
        %v1111 = vpop.f32.mrb[0].mxu0
        %v1112 = vpop.f32.mrb[0].mxu0
        %v1113 = vadd.f32 %v1019, %v1112
        %v1114 = vpop.f32.mrb[0].mxu0
        %1115 = vmatprep.mubr.bf16.mxu0 0
        %1116 = vmatmul.mubr.bf16.gmra.mrb[0].mxu0 %v1068
        %v1117 = vpop.f32.mrb[0].mxu0
        %v1118 = vadd.f32 %v1024, %v1117
        %v1119 = vpop.f32.mrb[0].mxu0
        %v1120 = vpop.f32.mrb[0].mxu0
        %v1121 = vadd.f32 %v1029, %v1120
        %v1122 = vpop.f32.mrb[0].mxu0
        %1123 = vmatprep.mubr.bf16.mxu0 0
        %1124 = vmatmul.mubr.bf16.gmra.mrb[0].mxu0 %v1069
        %v1125 = vpop.f32.mrb[0].mxu0
        %v1126 = vadd.f32 %v1034, %v1125
        %v1127 = vpop.f32.mrb[0].mxu0
        %v1128 = vpop.f32.mrb[0].mxu0
        %v1129 = vadd.f32 %v1039, %v1128
        %v1130 = vpop.f32.mrb[0].mxu0
        %1131 = vmatprep.mubr.bf16.mxu0 0
        %1132 = vmatmul.mubr.bf16.gmra.mrb[0].mxu0 %v1070
        %v1133 = vpop.f32.mrb[0].mxu0
        %v1134 = vadd.f32 %v1044, %v1133
        %v1135 = vpop.f32.mrb[0].mxu0
        %v1136 = vpop.f32.mrb[0].mxu0
        %v1137 = vadd.f32 %v1049, %v1136
        %v1138 = vpop.f32.mrb[0].mxu0
        %1139 = vdwg.mxu0
        %v1140 = vtanh.pop %v1110
        %v1141 = vtanh.pop %v1113
        %v1142 = vtanh.pop %v1118
        %v1143 = vtanh.pop %v1121
        %v1144 = vmul.f32 %v1140, 1.442695
        %v1145 = vpow.pop %v1144
        %v1146 = vmul.f32 %v1141, 1.442695
        %v1147 = vpow.pop %v1146
        %v1148 = vmul.f32 %v1142, 1.442695
        %v1149 = vpow.pop %v1148
        %v1150 = vmul.f32 %v1143, 1.442695
        %v1151 = vpow.pop %v1150
        %v1152 = vmul.f32 %v378, %v1145
        %v1153 = vmul.f32 %v379, %v1147
        %v1154 = vmul.f32 %v380, %v1149
        %v1155 = vmul.f32 %v381, %v1151
        %v1156 = vadd.f32 %v1152, %v1126
        %v1157 = vadd.f32 %v1153, %v1129
        %v1158 = vadd.f32 %v1154, %v1134
        %v1159 = vadd.f32 %v1155, %v1137
        %1161 = vset.pattern.permute.xlu0 0
        %1162 = vperm.xlu0 %1161, %v386
        %v1163 = vpop.permute.xlu0 %1162
        %1166 = vset.pattern.permute.xlu0 0
        %1167 = vperm.xlu0 %1166, %v387
        %v1168 = vpop.permute.xlu0 %1167
        %1171 = vset.pattern.permute.xlu0 0
        %1172 = vperm.xlu0 %1171, %v388
        %v1173 = vpop.permute.xlu0 %1172
        %1176 = vset.pattern.permute.xlu0 0
        %1177 = vperm.xlu0 %1176, %v389
        %v1178 = vpop.permute.xlu0 %1177
        %v1180 = vmul.f32 %v1163, %v1156
        %v1181 = vmul.f32 %v1168, %v1157
        %v1182 = vmul.f32 %v1173, %v1158
        %v1183 = vmul.f32 %v1178, %v1159
        %v1184 = vadd.f32 %v410, %v1180
        %v1185 = vadd.f32 %v411, %v1181
        %v1186 = vadd.f32 %v412, %v1182
        %v1187 = vadd.f32 %v413, %v1183
        %1188 = vst [vmem:[%s376] sm:$0xff] %v1184
        %1189 = vst [vmem:[%s376 + $0x8] sm:$0xff] %v1185
        %1190 = vst [vmem:[%s376 + $0x10] sm:$0xff] %v1186
        %1191 = vst [vmem:[%s376 + $0x18] sm:$0xff] %v1187
        %s1192 = sand.u32 %s225, 1
        %s1193 = scalar_lea.sflag [#allocation4], %s1192
        %s1194 = sand.u32 %s225, 1
        %s1195 = smul.addr %s1194, 32
        %s1196 = scalar_lea.vmem [#allocation3], %s1195
        // Predicated region
        $region95: #{coupling_layer_pallas.1} parent=89 // pred_check
          %p1197 = pneg %p235
        $region96: #{coupling_layer_pallas.1} parent=89 // pred_check_branch
          %1199 = sbr.rel (%p1197) target = $region98
        $region97: #{coupling_layer_pallas.1} parent=89 // pred_region
          %s1201 = ssub.s32 512, 512
          %1202 = vsyncadd %s1193, %s1201
          %s1203 = smul.addr %s23, 128
          %s1204 = scalar_lea.hbm %s9, %s1203
          %s1205 = sshll.u32 %s1196, 4
          %s1206 = int_to_ptr.vmem [resolvable:$true] %s1205
          %1211 = dma.vmem_to_hbm [thread:$0]  %s1206, 512, %s1204, %s1193, 128, 256, 8
        $region98: #{coupling_layer_pallas.1} parent=89 // pred_fallthru
          _
      $region90: #{coupling_layer_pallas.1} parent=5 // pred_fallthru
        _
      %p1212 = scmp.le.s32.totalorder 2, %s18
      // Predicated region
      $region99: #{coupling_layer_pallas.1} parent=5 // pred_check
        %p1213 = pneg %p1212
      $region100: #{coupling_layer_pallas.1} parent=5 // pred_check_branch
        %1215 = sbr.rel (%p1213) target = $region102
      $region101: #{coupling_layer_pallas.1} parent=5 // pred_region
        %s1216 = ssub.s32 %s18, 2
        // Predicated region
        $region103: #{coupling_layer_pallas.1} parent=101 // pred_check
          %p1217 = pneg %p241
        $region104: #{coupling_layer_pallas.1} parent=101 // pred_check_branch
          %1219 = sbr.rel (%p1217) target = $region106
        $region105: #{coupling_layer_pallas.1} parent=101 // pred_region
          %s1220 = sand.u32 %s226, 1
          %s1221 = scalar_lea.sflag [#allocation4], %s1220
          %s1222 = sand.u32 %s226, 1
          %s1223 = smul.addr %s1222, 32
          %s1224 = scalar_lea.vmem [#allocation3], %s1223
          %1225 = dma.done %s1221, 512
        $region106: #{coupling_layer_pallas.1} parent=101 // pred_fallthru
          _
      $region102: #{coupling_layer_pallas.1} parent=5 // pred_fallthru
        _
    $region6: #{coupling_layer_pallas.1} parent=1 // loop_footer
      %s22 = sadd.s32 1, %s18
    $region7: #{coupling_layer_pallas.1} parent=1 // loop_footer_branch
      %17 = sbr.rel target = $region3
    $region8: #{coupling_layer_pallas.1} parent=1 // loop_exit
      _
    %1226 = vsyncpa [#allocation4], 1
    %s1227 = scalar_lea.sflag [#allocation4], 1
    %1228 = vsyncpa %s1227, 1

</llo_original>
